<compile_context>
chip_gen: v5e
topology: v5e:2x2
jax: 0.10.0
libtpu: 0.0.40
codegen_flags: <defaults>
</compile_context>

<pallas_src>
import functools

import jax
import jax.numpy as jnp
from jax.experimental import pallas as pl
from jax.experimental.pallas import tpu as pltpu

_LANES = 128          # batch tile granularity (lane axis)
_MAX_TB = 16384       # ~9 MiB of VMEM at ~0.5 KB/row -> fits every generation


def _round_up(n, m):
    return ((n + m - 1) // m) * m


def mlp_kernel(x_ref, w1_ref, b1_ref, w2_ref, b2_ref, w3_ref, b3_ref, o_ref):
    # x_ref: (3, TB) with batch on the lane axis.
    # Weights in torch layout (out_f, in_f); biases (out_f, 1).
    # All matmuls / bias-adds / ReLUs in f32.
    x = x_ref[...]
    h1 = jnp.dot(w1_ref[...], x, preferred_element_type=jnp.float32)    # (50, TB)
    h1 = jnp.maximum(h1 + b1_ref[...], 0.0)
    h2 = jnp.dot(w2_ref[...], h1, preferred_element_type=jnp.float32)   # (20, TB)
    h2 = jnp.maximum(h2 + b2_ref[...], 0.0)
    h3 = jnp.dot(w3_ref[...], h2, preferred_element_type=jnp.float32)   # (2, TB)
    o_ref[...] = jnp.maximum(h3 + b3_ref[...], 0.0).astype(o_ref.dtype)


@functools.partial(jax.jit, static_argnames=("block_b",))
def net_forward(x, params, *, block_b=8192):
    """3-layer MLP forward (ReLU(x @ W.T + b) per layer) as one batch-tiled,
    lane-dense Pallas kernel operating on x transposed."""
    w1, b1, w2, b2, w3, b3 = params

    squeeze = x.ndim == 1
    if squeeze:
        x = x[None, :]
    B, f_in = x.shape
    assert f_in == 3

    # Batch lives on the lane axis -> tile must be a multiple of 128; cap so
    # the double-buffered tiles + f32 intermediates fit the 32 MiB VMEM budget.
    block_b = min(max(_LANES, _round_up(block_b, _LANES)), _MAX_TB)
    tb = min(block_b, _round_up(B, _LANES))
    b_pad = _round_up(B, tb)

    # Deliver x transposed (3, b_pad): batch is lane-dense inside the kernel.
    xt = x.T
    if b_pad != B:
        # Padded tail columns compute relu(bias) garbage; sliced off below.
        xt = jnp.pad(xt, ((0, 0), (0, b_pad - B)))

    out_t = pl.pallas_call(
        mlp_kernel,
        out_shape=jax.ShapeDtypeStruct((2, b_pad), jnp.float32),
        grid_spec=pltpu.PrefetchScalarGridSpec(
            num_scalar_prefetch=0,
            grid=(b_pad // tb,),
            in_specs=[
                pl.BlockSpec((3, tb), lambda i: (0, i)),     # x^T: streamed
                pl.BlockSpec((50, 3), lambda i: (0, 0)),     # w1: VMEM-resident
                pl.BlockSpec((50, 1), lambda i: (0, 0)),     # b1: VMEM-resident
                pl.BlockSpec((20, 50), lambda i: (0, 0)),    # w2: VMEM-resident
                pl.BlockSpec((20, 1), lambda i: (0, 0)),     # b2: VMEM-resident
                pl.BlockSpec((2, 20), lambda i: (0, 0)),     # w3: VMEM-resident
                pl.BlockSpec((2, 1), lambda i: (0, 0)),      # b3: VMEM-resident
            ],
            out_specs=pl.BlockSpec((2, tb), lambda i: (0, i)),
        ),
        compiler_params=pltpu.CompilerParams(
            # Batch tiles are independent -> megacore sharding on v7x.
            dimension_semantics=("parallel",),
            # Explicit budget: safe under v7x's 64 MiB physical / 32 MiB
            # default scoped VMEM; tiles above use ~0.5 KB per batch row.
            vmem_limit_bytes=32 * 1024 * 1024,
        ),
    )(xt, w1, b1, w2, b2, w3, b3)

    out = out_t.T[:B]
    return out[0] if squeeze else out


def init_params(key):
    """Deterministic init mimicking torch.nn.Linear defaults
    (uniform(-1/sqrt(fan_in), 1/sqrt(fan_in))), stored in torch layout:
    W: (out_features, in_features), b: (out_features, 1)."""
    dims = [(3, 50), (50, 20), (20, 2)]
    params = []
    for fan_in, fan_out in dims:
        key, kw, kb = jax.random.split(key, 3)
        bound = 1.0 / float(fan_in) ** 0.5
        w = jax.random.uniform(kw, (fan_out, fan_in), jnp.float32, -bound, bound)
        b = jax.random.uniform(kb, (fan_out, 1), jnp.float32, -bound, bound)
        params.extend([w, b])
    return tuple(params)


def net_forward_ref(x, params):
    """Pure-JAX f32 reference (y = x @ W.T + b, ReLU per layer)."""
    w1, b1, w2, b2, w3, b3 = params
    h = jnp.maximum(x @ w1.T + b1[:, 0], 0.0)
    h = jnp.maximum(h @ w2.T + b2[:, 0], 0.0)
    return jnp.maximum(h @ w3.T + b3[:, 0], 0.0)


if __name__ == "__main__":
    key = jax.random.PRNGKey(0)
    key, kx = jax.random.split(key)
    params = init_params(key)

    # Small batch of 3-dim state vectors; B deliberately not a multiple of the
    # lane tile so the padding / tail path is exercised.
    B = 200
    x = jax.random.normal(kx, (B, 3), dtype=jnp.float32)
    ref = net_forward_ref(x, params)

    # End-to-end f32; tolerance covers the MXU's internal decomposition of
    # f32 matmuls (observed error is typically far smaller, ~1e-6).
    ATOL = RTOL = 1e-2

    # Default path: tb = round_up(200, 128) = 256 -> single grid step.
    out = jax.block_until_ready(net_forward(x, params))
    assert out.shape == (B, 2)
    assert jnp.allclose(out, ref, atol=ATOL, rtol=RTOL), \
        float(jnp.max(jnp.abs(out - ref)))

    # Multi-step path: block_b=128 -> tb=128, b_pad=256, 2 grid steps.
    out2 = jax.block_until_ready(net_forward(x, params, block_b=128))
    assert jnp.allclose(out2, ref, atol=ATOL, rtol=RTOL), \
        float(jnp.max(jnp.abs(out2 - ref)))

    # Single-vector path (torch forward docstring: "An input vector").
    v = x[0]
    outv = jax.block_until_ready(net_forward(v, params))
    assert outv.shape == (2,)
    assert jnp.allclose(outv, ref[0], atol=ATOL, rtol=RTOL)

    print("KERNEL_OK")
</pallas_src>

<mosaic_0001>
module attributes {stable_mosaic.version = 11 : i64} {
  func.func @mlp_kernel(%arg0: i32, %arg1: memref<3x256xf32, #tpu.memory_space<vmem>>, %arg2: memref<50x3xf32, #tpu.memory_space<vmem>>, %arg3: memref<50x1xf32, #tpu.memory_space<vmem>>, %arg4: memref<20x50xf32, #tpu.memory_space<vmem>>, %arg5: memref<20x1xf32, #tpu.memory_space<vmem>>, %arg6: memref<2x20xf32, #tpu.memory_space<vmem>>, %arg7: memref<2x1xf32, #tpu.memory_space<vmem>>, %arg8: memref<2x256xf32, #tpu.memory_space<vmem>>) attributes {dimension_semantics = [#tpu.dimension_semantics<parallel>], iteration_bounds = array<i64: 1>, scalar_prefetch = 0 : i64, scratch_operands = 0 : i64, tpu.core_type = #tpu.core_type<tc>, window_params = [{transform_indices = @transform_0, window_bounds = array<i64: 3, 256>}, {pipeline_mode = #tpu.pipeline_mode<synchronous>, transform_indices = @transform_1, window_bounds = array<i64: 50, 3>}, {pipeline_mode = #tpu.pipeline_mode<synchronous>, transform_indices = @transform_2, window_bounds = array<i64: 50, 1>}, {pipeline_mode = #tpu.pipeline_mode<synchronous>, transform_indices = @transform_3, window_bounds = array<i64: 20, 50>}, {pipeline_mode = #tpu.pipeline_mode<synchronous>, transform_indices = @transform_4, window_bounds = array<i64: 20, 1>}, {pipeline_mode = #tpu.pipeline_mode<synchronous>, transform_indices = @transform_5, window_bounds = array<i64: 2, 20>}, {pipeline_mode = #tpu.pipeline_mode<synchronous>, transform_indices = @transform_6, window_bounds = array<i64: 2, 1>}, {transform_indices = @transform_7, window_bounds = array<i64: 2, 256>}]} {
    %c0 = arith.constant 0 : index
    %c0_0 = arith.constant 0 : index
    %0 = vector.load %arg1[%c0, %c0_0] : memref<3x256xf32, #tpu.memory_space<vmem>>, vector<3x256xf32>
    %c0_1 = arith.constant 0 : index
    %c0_2 = arith.constant 0 : index
    %1 = vector.load %arg2[%c0_1, %c0_2] : memref<50x3xf32, #tpu.memory_space<vmem>>, vector<50x3xf32>
    %cst = arith.constant dense<0.000000e+00> : vector<50x256xf32>
    %2 = tpu.matmul %1, %0, %cst {dimension_numbers = #tpu.dot_dimension_numbers<[1], [0], [0], [1], [0, 0, 1, 1], [], []>} : vector<50x3xf32>, vector<3x256xf32>, vector<50x256xf32> -> vector<50x256xf32>
    %c0_3 = arith.constant 0 : index
    %c0_4 = arith.constant 0 : index
    %3 = vector.load %arg3[%c0_3, %c0_4] : memref<50x1xf32, #tpu.memory_space<vmem>>, vector<50x1xf32>
    %4 = vector.broadcast %3 : vector<50x1xf32> to vector<50x256xf32>
    %5 = arith.addf %2, %4 : vector<50x256xf32>
    %cst_5 = arith.constant 0.000000e+00 : f32
    %6 = vector.broadcast %cst_5 : f32 to vector<50x256xf32>
    %7 = arith.maximumf %5, %6 : vector<50x256xf32>
    %c0_6 = arith.constant 0 : index
    %c0_7 = arith.constant 0 : index
    %8 = vector.load %arg4[%c0_6, %c0_7] : memref<20x50xf32, #tpu.memory_space<vmem>>, vector<20x50xf32>
    %cst_8 = arith.constant dense<0.000000e+00> : vector<20x256xf32>
    %9 = tpu.matmul %8, %7, %cst_8 {dimension_numbers = #tpu.dot_dimension_numbers<[1], [0], [0], [1], [0, 0, 1, 1], [], []>} : vector<20x50xf32>, vector<50x256xf32>, vector<20x256xf32> -> vector<20x256xf32>
    %c0_9 = arith.constant 0 : index
    %c0_10 = arith.constant 0 : index
    %10 = vector.load %arg5[%c0_9, %c0_10] : memref<20x1xf32, #tpu.memory_space<vmem>>, vector<20x1xf32>
    %11 = vector.broadcast %10 : vector<20x1xf32> to vector<20x256xf32>
    %12 = arith.addf %9, %11 : vector<20x256xf32>
    %cst_11 = arith.constant 0.000000e+00 : f32
    %13 = vector.broadcast %cst_11 : f32 to vector<20x256xf32>
    %14 = arith.maximumf %12, %13 : vector<20x256xf32>
    %c0_12 = arith.constant 0 : index
    %c0_13 = arith.constant 0 : index
    %15 = vector.load %arg6[%c0_12, %c0_13] : memref<2x20xf32, #tpu.memory_space<vmem>>, vector<2x20xf32>
    %cst_14 = arith.constant dense<0.000000e+00> : vector<2x256xf32>
    %16 = tpu.matmul %15, %14, %cst_14 {dimension_numbers = #tpu.dot_dimension_numbers<[1], [0], [0], [1], [0, 0, 1, 1], [], []>} : vector<2x20xf32>, vector<20x256xf32>, vector<2x256xf32> -> vector<2x256xf32>
    %c0_15 = arith.constant 0 : index
    %c0_16 = arith.constant 0 : index
    %17 = vector.load %arg7[%c0_15, %c0_16] : memref<2x1xf32, #tpu.memory_space<vmem>>, vector<2x1xf32>
    %18 = vector.broadcast %17 : vector<2x1xf32> to vector<2x256xf32>
    %19 = arith.addf %16, %18 : vector<2x256xf32>
    %cst_17 = arith.constant 0.000000e+00 : f32
    %20 = vector.broadcast %cst_17 : f32 to vector<2x256xf32>
    %21 = arith.maximumf %19, %20 : vector<2x256xf32>
    %c0_18 = arith.constant 0 : index
    %c0_19 = arith.constant 0 : index
    %22 = vector.load %arg8[%c0_18, %c0_19] : memref<2x256xf32, #tpu.memory_space<vmem>>, vector<2x256xf32>
    tpu.vector_store %arg8[%c0_18, %c0_19], %21 {strides = array<i32>} : memref<2x256xf32, #tpu.memory_space<vmem>>, vector<2x256xf32>,
    return
  }
  func.func @transform_0(%arg0: i32) -> (i32, i32) {
    %c0_i32 = arith.constant 0 : i32
    %c0_i32_0 = arith.constant 0 : i32
    return %c0_i32, %arg0 : i32, i32
  }
  func.func @transform_1(%arg0: i32) -> (i32, i32) {
    %c0_i32 = arith.constant 0 : i32
    %c0_i32_0 = arith.constant 0 : i32
    %c0_i32_1 = arith.constant 0 : i32
    return %c0_i32, %c0_i32_0 : i32, i32
  }
  func.func @transform_2(%arg0: i32) -> (i32, i32) {
    %c0_i32 = arith.constant 0 : i32
    %c0_i32_0 = arith.constant 0 : i32
    %c0_i32_1 = arith.constant 0 : i32
    return %c0_i32, %c0_i32_0 : i32, i32
  }
  func.func @transform_3(%arg0: i32) -> (i32, i32) {
    %c0_i32 = arith.constant 0 : i32
    %c0_i32_0 = arith.constant 0 : i32
    %c0_i32_1 = arith.constant 0 : i32
    return %c0_i32, %c0_i32_0 : i32, i32
  }
  func.func @transform_4(%arg0: i32) -> (i32, i32) {
    %c0_i32 = arith.constant 0 : i32
    %c0_i32_0 = arith.constant 0 : i32
    %c0_i32_1 = arith.constant 0 : i32
    return %c0_i32, %c0_i32_0 : i32, i32
  }
  func.func @transform_5(%arg0: i32) -> (i32, i32) {
    %c0_i32 = arith.constant 0 : i32
    %c0_i32_0 = arith.constant 0 : i32
    %c0_i32_1 = arith.constant 0 : i32
    return %c0_i32, %c0_i32_0 : i32, i32
  }
  func.func @transform_6(%arg0: i32) -> (i32, i32) {
    %c0_i32 = arith.constant 0 : i32
    %c0_i32_0 = arith.constant 0 : i32
    %c0_i32_1 = arith.constant 0 : i32
    return %c0_i32, %c0_i32_0 : i32, i32
  }
  func.func @transform_7(%arg0: i32) -> (i32, i32) {
    %c0_i32 = arith.constant 0 : i32
    %c0_i32_0 = arith.constant 0 : i32
    return %c0_i32, %arg0 : i32, i32
  }
}

</mosaic_0001>

<llo_original>
// kernel: net_forward.1
$region0: #{net_forward.1}
  #allocation0 [shape = 'u32[]', space=smem, size = 0x4, offset = 0x4, fixed_abs, tag = 'smem constant byte address 0x4 - core index']
  #allocation1 [shape = 'u32[72,128]{1,0:T(1,128)}', space=vmem, size = 0x9000, scoped, tag = 'internal scratch']
  %s0 = inlined_call_operand.vmem [shape: f32[3,256], index: 0, kind: input, shape index: {}]
  %s1 = inlined_call_operand.vmem [shape: f32[50,3], index: 1, kind: input, shape index: {}]
  %s2 = inlined_call_operand.vmem [shape: f32[50,1], index: 2, kind: input, shape index: {}]
  %s3 = inlined_call_operand.vmem [shape: f32[20,50], index: 3, kind: input, shape index: {}]
  %s4 = inlined_call_operand.vmem [shape: f32[20,1], index: 4, kind: input, shape index: {}]
  %s5 = inlined_call_operand.vmem [shape: f32[2,20], index: 5, kind: input, shape index: {}]
  %s6 = inlined_call_operand.vmem [shape: f32[2,1], index: 6, kind: input, shape index: {}]
  %s7 = inlined_call_operand.hbm [shape: f32[2,256], index: 7, kind: output, shape index: {}]
  %s8 = sld [smem:[#allocation0]]
  $region38: #{net_forward.1} parent=0
    _
  %s10 = ssub.s32 1, %s8
  %s11 = scalar_select 0, %s10, %s8
  $region1: #{net_forward.1} parent=0
    #allocation2 [shape = 'u8[2048]{0}', space=vmem, size = 0x800, scoped, tag = 'output window, operand 0, single buffered']
    #allocation3 [shape = 's32[1]{0}', space=sflag, size = 0x4, scoped, tag = 'scoped memory for net_forward.1']
    %12 = vsyncpa [#allocation3], 0
    // Predicated region
    $region2: #{net_forward.1} parent=1 // pred_check
      _
    $region3: #{net_forward.1} parent=1 // pred_check_branch
      %14 = sbr.rel (0) target = $region5
    $region4: #{net_forward.1} parent=1 // pred_region
      _
    $region5: #{net_forward.1} parent=1 // pred_fallthru
      _
    // Predicated region
    $region6: #{net_forward.1} parent=1 // pred_check
      _
    $region7: #{net_forward.1} parent=1 // pred_check_branch
      %16 = sbr.rel (0) target = $region9
    $region8: #{net_forward.1} parent=1 // pred_region
      _
    $region9: #{net_forward.1} parent=1 // pred_fallthru
      _
    // Predicated region
    $region10: #{net_forward.1} parent=1 // pred_check
      _
    $region11: #{net_forward.1} parent=1 // pred_check_branch
      %18 = sbr.rel (0) target = $region13
    $region12: #{net_forward.1} parent=1 // pred_region
      _
    $region13: #{net_forward.1} parent=1 // pred_fallthru
      _
    // Predicated region
    $region14: #{net_forward.1} parent=1 // pred_check
      _
    $region15: #{net_forward.1} parent=1 // pred_check_branch
      %20 = sbr.rel (0) target = $region17
    $region16: #{net_forward.1} parent=1 // pred_region
      _
    $region17: #{net_forward.1} parent=1 // pred_fallthru
      _
    // Predicated region
    $region18: #{net_forward.1} parent=1 // pred_check
      _
    $region19: #{net_forward.1} parent=1 // pred_check_branch
      %22 = sbr.rel (0) target = $region21
    $region20: #{net_forward.1} parent=1 // pred_region
      _
    $region21: #{net_forward.1} parent=1 // pred_fallthru
      _
    // Predicated region
    $region22: #{net_forward.1} parent=1 // pred_check
      _
    $region23: #{net_forward.1} parent=1 // pred_check_branch
      %24 = sbr.rel (0) target = $region25
    $region24: #{net_forward.1} parent=1 // pred_region
      _
    $region25: #{net_forward.1} parent=1 // pred_fallthru
      _
    // Predicated region
    $region26: #{net_forward.1} parent=1 // pred_check
      _
    $region27: #{net_forward.1} parent=1 // pred_check_branch
      %26 = sbr.rel (0) target = $region29
    $region28: #{net_forward.1} parent=1 // pred_region
      _
    $region29: #{net_forward.1} parent=1 // pred_fallthru
      _
    %v27 = vld [vmem:[%s0] sm:$0x77]
    %v28 = vld [vmem:[%s1] sm:$0xff]
    %v29 = vld [vmem:[%s1 + $0x8] sm:$0xff]
    %v30 = vld [vmem:[%s1 + $0x10] sm:$0xff]
    %v31 = vld [vmem:[%s1 + $0x18] sm:$0xff]
    %v32 = vld [vmem:[%s1 + $0x20] sm:$0xff]
    %v33 = vld [vmem:[%s1 + $0x28] sm:$0xff]
    %v34 = vld [vmem:[%s1 + $0x30] sm:$0x3]
    %v35 = vld [vmem:[%s2] sm:$0xff]
    %v36 = vld [vmem:[%s2 + $0x8] sm:$0xff]
    %v37 = vld [vmem:[%s2 + $0x10] sm:$0xff]
    %v38 = vld [vmem:[%s2 + $0x18] sm:$0xff]
    %v39 = vld [vmem:[%s2 + $0x20] sm:$0xff]
    %v40 = vld [vmem:[%s2 + $0x28] sm:$0xff]
    %v41 = vld [vmem:[%s2 + $0x30] sm:$0x3]
    %43 = vset.pattern.permute.xlu0 0
    %44 = vperm.xlu0 %43, %v35
    %v45 = vpop.permute.xlu0 %44
    %48 = vset.pattern.permute.xlu0 0
    %49 = vperm.xlu0 %48, %v36
    %v50 = vpop.permute.xlu0 %49
    %53 = vset.pattern.permute.xlu0 0
    %54 = vperm.xlu0 %53, %v37
    %v55 = vpop.permute.xlu0 %54
    %58 = vset.pattern.permute.xlu0 0
    %59 = vperm.xlu0 %58, %v38
    %v60 = vpop.permute.xlu0 %59
    %63 = vset.pattern.permute.xlu0 0
    %64 = vperm.xlu0 %63, %v39
    %v65 = vpop.permute.xlu0 %64
    %68 = vset.pattern.permute.xlu0 0
    %69 = vperm.xlu0 %68, %v40
    %v70 = vpop.permute.xlu0 %69
    %73 = vset.pattern.permute.xlu0 0
    %74 = vperm.xlu0 %73, %v41
    %v75 = vpop.permute.xlu0 %74
    %78 = vst [vmem:[#allocation1] ss:$2 sm:$0xff] %v27
    %v79 = vld.sshfl [vmem:[#allocation1] sm:$0xff pattern:$0x75316420]
    %v80 = vld.sshfl [vmem:[#allocation1 + $0x8] sm:$0xff pattern:$0x75316420]
    %vm81 = vcmask 23552
    %v83 = vsel %vm81, %v28, 0
    %v86 = vsel %vm81, %v29, 0
    %v89 = vsel %vm81, %v30, 0
    %v92 = vsel %vm81, %v31, 0
    %v95 = vsel %vm81, %v32, 0
    %v98 = vsel %vm81, %v33, 0
    %v101 = vsel %vm81, %v34, 0
    %vm103 = vcmask 1042432
    %v104 = vsel %vm103, %v79, 0
    %v106 = vsel %vm103, %v80, 0
    %108 = vmatpush.msra.mxu0 0.0
    %109 = vmatpush.msra.mxu0 0.0
    %110 = vmatpush.msra.mxu0 0.0
    %111 = vmatpush.msra.mxu0 0.0
    %112 = vmatpush.msra.mxu0 0.0
    %113 = vmatpush.msra.mxu0 0.0
    %114 = vmatpush.msra.mxu0 0.0
    %115 = vmatpush.msra.mxu0 0.0
    %116 = vmatpush.msra.mxu0 0.0
    %117 = vmatpush.msra.mxu0 0.0
    %118 = vmatpush.msra.mxu0 0.0
    %119 = vmatpush.msra.mxu0 0.0
    %120 = vmatpush.msra.mxu0 0.0
    %121 = vmatpush.msra.mxu0 0.0
    %122 = vmatpush.msra.mxu0 0.0
    %123 = vmatpush.msra.mxu0 %v104
    %124 = vmatmul.f32.gmra.mxu0 %v83
    %v125 = vpop.f32.mrf.mxu0
    %v126 = vadd.f32 %v45, %v125
    %127 = vmatmul.f32.gmra.mxu0 %v86
    %v128 = vpop.f32.mrf.mxu0
    %v129 = vadd.f32 %v50, %v128
    %130 = vmatmul.f32.gmra.mxu0 %v89
    %v131 = vpop.f32.mrf.mxu0
    %v132 = vadd.f32 %v55, %v131
    %133 = vmatmul.f32.gmra.mxu0 %v92
    %v134 = vpop.f32.mrf.mxu0
    %v135 = vadd.f32 %v60, %v134
    %136 = vmatmul.f32.gmra.mxu0 %v95
    %v137 = vpop.f32.mrf.mxu0
    %v138 = vadd.f32 %v65, %v137
    %139 = vmatmul.f32.gmra.mxu0 %v98
    %v140 = vpop.f32.mrf.mxu0
    %v141 = vadd.f32 %v70, %v140
    %142 = vmatmul.f32.gmra.mxu0 %v101
    %v143 = vpop.f32.mrf.mxu0
    %v144 = vadd.f32 %v75, %v143
    %145 = vdwg.mxu0
    %146 = vmatpush.msra.mxu0 0.0
    %147 = vmatpush.msra.mxu0 0.0
    %148 = vmatpush.msra.mxu0 0.0
    %149 = vmatpush.msra.mxu0 0.0
    %150 = vmatpush.msra.mxu0 0.0
    %151 = vmatpush.msra.mxu0 0.0
    %152 = vmatpush.msra.mxu0 0.0
    %153 = vmatpush.msra.mxu0 0.0
    %154 = vmatpush.msra.mxu0 0.0
    %155 = vmatpush.msra.mxu0 0.0
    %156 = vmatpush.msra.mxu0 0.0
    %157 = vmatpush.msra.mxu0 0.0
    %158 = vmatpush.msra.mxu0 0.0
    %159 = vmatpush.msra.mxu0 0.0
    %160 = vmatpush.msra.mxu0 0.0
    %161 = vmatpush.msra.mxu0 %v106
    %162 = vmatmul.f32.gmra.mxu0 %v83
    %v163 = vpop.f32.mrf.mxu0
    %v164 = vadd.f32 %v45, %v163
    %165 = vmatmul.f32.gmra.mxu0 %v86
    %v166 = vpop.f32.mrf.mxu0
    %v167 = vadd.f32 %v50, %v166
    %168 = vmatmul.f32.gmra.mxu0 %v89
    %v169 = vpop.f32.mrf.mxu0
    %v170 = vadd.f32 %v55, %v169
    %171 = vmatmul.f32.gmra.mxu0 %v92
    %v172 = vpop.f32.mrf.mxu0
    %v173 = vadd.f32 %v60, %v172
    %174 = vmatmul.f32.gmra.mxu0 %v95
    %v175 = vpop.f32.mrf.mxu0
    %v176 = vadd.f32 %v65, %v175
    %177 = vmatmul.f32.gmra.mxu0 %v98
    %v178 = vpop.f32.mrf.mxu0
    %v179 = vadd.f32 %v70, %v178
    %180 = vmatmul.f32.gmra.mxu0 %v101
    %v181 = vpop.f32.mrf.mxu0
    %v182 = vadd.f32 %v75, %v181
    %183 = vdwg.mxu0
    %v184 = vmax.f32 %v126, 0.0
    %v185 = vmax.f32 %v164, 0.0
    %v186 = vmax.f32 %v129, 0.0
    %v187 = vmax.f32 %v167, 0.0
    %v188 = vmax.f32 %v132, 0.0
    %v189 = vmax.f32 %v170, 0.0
    %v190 = vmax.f32 %v135, 0.0
    %v191 = vmax.f32 %v173, 0.0
    %v192 = vmax.f32 %v138, 0.0
    %v193 = vmax.f32 %v176, 0.0
    %v194 = vmax.f32 %v141, 0.0
    %v195 = vmax.f32 %v179, 0.0
    %v196 = vmax.f32 %v144, 0.0
    %v197 = vmax.f32 %v182, 0.0
    %v198 = vld [vmem:[%s3] sm:$0xff]
    %v199 = vld [vmem:[%s3 + $0x8] sm:$0xff]
    %v200 = vld [vmem:[%s3 + $0x10] sm:$0xf]
    %v201 = vld [vmem:[%s4] sm:$0xff]
    %v202 = vld [vmem:[%s4 + $0x8] sm:$0xff]
    %v203 = vld [vmem:[%s4 + $0x10] sm:$0xf]
    %205 = vset.pattern.permute.xlu0 0
    %206 = vperm.xlu0 %205, %v201
    %v207 = vpop.permute.xlu0 %206
    %210 = vset.pattern.permute.xlu0 0
    %211 = vperm.xlu0 %210, %v202
    %v212 = vpop.permute.xlu0 %211
    %215 = vset.pattern.permute.xlu0 0
    %216 = vperm.xlu0 %215, %v203
    %v217 = vpop.permute.xlu0 %216
    %vm219 = vcmask 408576
    %v221 = vsel %vm219, %v198, 0
    %v224 = vsel %vm219, %v199, 0
    %v227 = vsel %vm219, %v200, 0
    %vm229 = vcmask 1041408
    %v231 = vsel %vm229, %v196, 0
    %v234 = vsel %vm229, %v197, 0
    %236 = vmatpush.msra.mxu0 0.0
    %237 = vmatpush.msra.mxu0 0.0
    %238 = vmatpush.msra.mxu0 0.0
    %239 = vmatpush.msra.mxu0 0.0
    %240 = vmatpush.msra.mxu0 0.0
    %241 = vmatpush.msra.mxu0 0.0
    %242 = vmatpush.msra.mxu0 0.0
    %243 = vmatpush.msra.mxu0 0.0
    %244 = vmatpush.msra.mxu0 0.0
    %245 = vmatpush.msra.mxu0 %v231
    %246 = vmatpush.msra.mxu0 %v194
    %247 = vmatpush.msra.mxu0 %v192
    %248 = vmatpush.msra.mxu0 %v190
    %249 = vmatpush.msra.mxu0 %v188
    %250 = vmatpush.msra.mxu0 %v186
    %251 = vmatpush.msra.mxu0 %v184
    %252 = vmatmul.f32.gmra.mxu0 %v221
    %v253 = vpop.f32.mrf.mxu0
    %v254 = vadd.f32 %v207, %v253
    %255 = vmatmul.f32.gmra.mxu0 %v224
    %v256 = vpop.f32.mrf.mxu0
    %v257 = vadd.f32 %v212, %v256
    %258 = vmatmul.f32.gmra.mxu0 %v227
    %v259 = vpop.f32.mrf.mxu0
    %v260 = vadd.f32 %v217, %v259
    %261 = vdwg.mxu0
    %262 = vmatpush.msra.mxu0 0.0
    %263 = vmatpush.msra.mxu0 0.0
    %264 = vmatpush.msra.mxu0 0.0
    %265 = vmatpush.msra.mxu0 0.0
    %266 = vmatpush.msra.mxu0 0.0
    %267 = vmatpush.msra.mxu0 0.0
    %268 = vmatpush.msra.mxu0 0.0
    %269 = vmatpush.msra.mxu0 0.0
    %270 = vmatpush.msra.mxu0 0.0
    %271 = vmatpush.msra.mxu0 %v234
    %272 = vmatpush.msra.mxu0 %v195
    %273 = vmatpush.msra.mxu0 %v193
    %274 = vmatpush.msra.mxu0 %v191
    %275 = vmatpush.msra.mxu0 %v189
    %276 = vmatpush.msra.mxu0 %v187
    %277 = vmatpush.msra.mxu0 %v185
    %278 = vmatmul.f32.gmra.mxu0 %v221
    %v279 = vpop.f32.mrf.mxu0
    %v280 = vadd.f32 %v207, %v279
    %281 = vmatmul.f32.gmra.mxu0 %v224
    %v282 = vpop.f32.mrf.mxu0
    %v283 = vadd.f32 %v212, %v282
    %284 = vmatmul.f32.gmra.mxu0 %v227
    %v285 = vpop.f32.mrf.mxu0
    %v286 = vadd.f32 %v217, %v285
    %287 = vdwg.mxu0
    %v288 = vmax.f32 %v254, 0.0
    %v289 = vmax.f32 %v280, 0.0
    %v290 = vmax.f32 %v257, 0.0
    %v291 = vmax.f32 %v283, 0.0
    %v292 = vmax.f32 %v260, 0.0
    %v293 = vmax.f32 %v286, 0.0
    %v294 = vld [vmem:[%s5] sm:$0x3]
    %v295 = vld [vmem:[%s6] sm:$0x3]
    %297 = vset.pattern.permute.xlu0 0
    %298 = vperm.xlu0 %297, %v295
    %v299 = vpop.permute.xlu0 %298
    %vm301 = vcmask 162816
    %v303 = vsel %vm301, %v294, 0
    %vm305 = vcmask 1043456
    %v307 = vsel %vm305, %v292, 0
    %v310 = vsel %vm305, %v293, 0
    %312 = vmatpush.msra.mxu0 0.0
    %313 = vmatpush.msra.mxu0 0.0
    %314 = vmatpush.msra.mxu0 0.0
    %315 = vmatpush.msra.mxu0 0.0
    %316 = vmatpush.msra.mxu0 0.0
    %317 = vmatpush.msra.mxu0 0.0
    %318 = vmatpush.msra.mxu0 0.0
    %319 = vmatpush.msra.mxu0 0.0
    %320 = vmatpush.msra.mxu0 0.0
    %321 = vmatpush.msra.mxu0 0.0
    %322 = vmatpush.msra.mxu0 0.0
    %323 = vmatpush.msra.mxu0 0.0
    %324 = vmatpush.msra.mxu0 0.0
    %325 = vmatpush.msra.mxu0 %v307
    %326 = vmatpush.msra.mxu0 %v290
    %327 = vmatpush.msra.mxu0 %v288
    %328 = vmatmul.f32.gmra.mxu0 %v303
    %v329 = vpop.f32.mrf.mxu0
    %v330 = vadd.f32 %v299, %v329
    %331 = vdwg.mxu0
    %332 = vmatpush.msra.mxu0 0.0
    %333 = vmatpush.msra.mxu0 0.0
    %334 = vmatpush.msra.mxu0 0.0
    %335 = vmatpush.msra.mxu0 0.0
    %336 = vmatpush.msra.mxu0 0.0
    %337 = vmatpush.msra.mxu0 0.0
    %338 = vmatpush.msra.mxu0 0.0
    %339 = vmatpush.msra.mxu0 0.0
    %340 = vmatpush.msra.mxu0 0.0
    %341 = vmatpush.msra.mxu0 0.0
    %342 = vmatpush.msra.mxu0 0.0
    %343 = vmatpush.msra.mxu0 0.0
    %344 = vmatpush.msra.mxu0 0.0
    %345 = vmatpush.msra.mxu0 %v310
    %346 = vmatpush.msra.mxu0 %v291
    %347 = vmatpush.msra.mxu0 %v289
    %348 = vmatmul.f32.gmra.mxu0 %v303
    %v349 = vpop.f32.mrf.mxu0
    %v350 = vadd.f32 %v299, %v349
    %351 = vdwg.mxu0
    %v352 = vmax.f32 %v330, 0.0
    %v353 = vmax.f32 %v350, 0.0
    %v356 = vrot.slane %v353, 6
    %v357 = vsel %vm229, %v352, %v356
    %359 = vst [vmem:[#allocation2] sm:$0xf] %v357
    // Predicated region
    $region30: #{net_forward.1} parent=1 // pred_check
      _
    $region31: #{net_forward.1} parent=1 // pred_check_branch
      %361 = sbr.rel (0) target = $region33
    $region32: #{net_forward.1} parent=1 // pred_region
      %363 = vsyncadd [#allocation3], 0
      %s365 = sshll.u32 [#allocation2], 4
      %s366 = int_to_ptr.vmem [resolvable:$true] %s365
      %s367 = sshll.u32 %s7, 4
      %s368 = int_to_ptr.hbm [resolvable:$true] %s367
      %370 = dma.vmem_to_hbm [thread:$0]  %s366, 64, %s368, [#allocation3]
    $region33: #{net_forward.1} parent=1 // pred_fallthru
      _
    // Predicated region
    $region34: #{net_forward.1} parent=1 // pred_check
      _
    $region35: #{net_forward.1} parent=1 // pred_check_branch
      %372 = sbr.rel (0) target = $region37
    $region36: #{net_forward.1} parent=1 // pred_region
      %374 = dma.done [#allocation3], 64
    $region37: #{net_forward.1} parent=1 // pred_fallthru
      _
    %375 = vsyncpa [#allocation3], 1

</llo_original>
